<compile_context>
chip_gen: v6e
topology: v6e:2x2x1
jax: 0.10.0
libtpu: 0.0.40
codegen_flags: <defaults>
</compile_context>

<pallas_src>
import functools

import jax
import jax.numpy as jnp
import numpy as np
from jax.experimental import pallas as pl
from jax.experimental.pallas import tpu as pltpu


def _round_up(x, m):
    return ((x + m - 1) // m) * m


def _vmem_limit():
    """~0.85 * physical VMEM, capped at 100 MB (fits v5e/v6e/v7x)."""
    cap = 0
    try:
        cap = int(pltpu.get_tpu_info().vmem_capacity_bytes)
    except Exception:
        cap = 0
    if cap < 16 * 1024 * 1024:
        cap = 64 * 1024 * 1024
    return min(100 * 1024 * 1024, int(cap * 0.85))


def _pick_batch_block(n, target=8):
    """Largest divisor of n that is <= target (amortizes weight streaming)."""
    b = min(n, target)
    while n % b:
        b -= 1
    return b


class ClipOutput(dict):
    """Same contents as the PyTorch ClipOutput, but save() takes (N, Lp, C)."""

    def __init__(self, spacial_shape, *args, **kwargs):
        super().__init__(*args, **kwargs)
        self.spacial_shape = spacial_shape

    def save(self, idx, clip_feat_nlc):
        n, _, c = clip_feat_nlc.shape
        h, w = self.spacial_shape
        body = clip_feat_nlc[:, 1:1 + h * w, :].astype(jnp.float32)
        self[idx] = jnp.transpose(body, (0, 2, 1)).reshape(n, c, h, w)
        cls = clip_feat_nlc[:, 0:1, :].astype(jnp.float32)
        self[f"{idx}_cls_token"] = jnp.transpose(cls, (1, 0, 2))


# ----------------------------- in-kernel helpers -----------------------------

def _layernorm(x, g, b, eps=1e-5):
    mu = jnp.mean(x, axis=-1, keepdims=True)
    var = jnp.mean((x - mu) ** 2, axis=-1, keepdims=True)
    return (x - mu) * jax.lax.rsqrt(var + eps) * g + b


# ----------------------------- Pallas kernels -----------------------------

def _embed_kernel(p_ref, w_ref, base_ref, g_ref, b_ref, o_ref):
    """conv1-as-matmul + (class token + positional embedding) + ln_pre.

    p_ref: (1, Lp, Kp) bf16 padded patches (row 0 and pad rows are zero)
    w_ref: (Kp, C) bf16 flattened conv1 weight
    base_ref: (Lp, C) f32 = [cls + pos[0]; pos[1:]; zeros]
    One aligned full-block store.
    """
    emb = jnp.dot(p_ref[0], w_ref[...], preferred_element_type=jnp.float32)   # (Lp, C)
    o_ref[0] = _layernorm(emb + base_ref[...], g_ref[...], b_ref[...])


def _transformer_kernel(x_ref,
                        ln1g_ref, ln1b_ref, wqkv_ref, bqkv_ref, wo_ref, bo_ref,
                        ln2g_ref, ln2b_ref, wfc_ref, bfc_ref, wproj_ref, bproj_ref,
                        o_feat_ref, o_final_ref, x_sc, ctx_sc,
                        *, num_heads, true_len):
    """One (batch-block, layer) grid step of the CLIP transformer.

    The residual stream for B sequences is carried in the f32 VMEM scratch
    `x_sc` across the layer axis; per-layer weights are streamed by BlockSpec
    over the layer axis and reused for all B sequences in the block.
    """
    l_idx = pl.program_id(1)
    B, Lp, C = x_ref.shape
    D = C // num_heads

    @pl.when(l_idx == 0)
    def _():
        x_sc[...] = x_ref[...].reshape(B * Lp, C)

    x = x_sc[...]                                            # (B*Lp, C) f32 residual

    # ---- multi-head self-attention on ln_1(x) ----
    h = _layernorm(x, ln1g_ref[0], ln1b_ref[0])
    qkv = jnp.dot(h.astype(jnp.bfloat16), wqkv_ref[0],
                  preferred_element_type=jnp.float32) + bqkv_ref[0]           # (B*Lp, 3C)
    # 1/sqrt(D) already folded into the Q columns of w_qkv/b_qkv at prep time.
    qb = qkv[:, :C].astype(jnp.bfloat16).reshape(B, Lp, C)
    kb = qkv[:, C:2 * C].astype(jnp.bfloat16).reshape(B, Lp, C)
    vb = qkv[:, 2 * C:].astype(jnp.bfloat16).reshape(B, Lp, C)

    # additive mask: padded key rows contribute exp(-inf) = 0
    kmask = jnp.where(
        jax.lax.broadcasted_iota(jnp.int32, (1, 1, Lp), 2) < true_len,
        0.0, -1e30).astype(jnp.float32)

    for hh in range(num_heads):                               # static unrolled head loop
        sl = slice(hh * D, (hh + 1) * D)
        s = jnp.einsum("bqd,bkd->bqk", qb[..., sl], kb[..., sl],
                       preferred_element_type=jnp.float32)                   # (B, Lp, Lp)
        s = s + kmask
        s = s - jnp.max(s, axis=-1, keepdims=True)
        p = jnp.exp(s)
        # approx reciprocal (EUP slot); ~1e-3 rel. error per row, within tolerance
        p = p * pl.reciprocal(jnp.sum(p, axis=-1, keepdims=True), approx=True)
        hv = jnp.einsum("bqk,bkd->bqd", p.astype(jnp.bfloat16), vb[..., sl],
                        preferred_element_type=jnp.float32)                  # (B, Lp, D)
        # write head output into the context scratch; W_o applied once after the loop
        ctx_sc[:, hh * D:(hh + 1) * D] = hv.reshape(B * Lp, D).astype(jnp.bfloat16)

    att = jnp.dot(ctx_sc[...], wo_ref[0],
                  preferred_element_type=jnp.float32) + bo_ref[0]             # (B*Lp, C)
    x = x + att

    # ---- MLP on ln_2(x) (QuickGELU) ----
    h2 = _layernorm(x, ln2g_ref[0], ln2b_ref[0])
    m = jnp.dot(h2.astype(jnp.bfloat16), wfc_ref[0],
                preferred_element_type=jnp.float32) + bfc_ref[0]
    m = m * jax.nn.sigmoid(1.702 * m)
    m = jnp.dot(m.astype(jnp.bfloat16), wproj_ref[0],
                preferred_element_type=jnp.float32) + bproj_ref[0]
    xnew = x + m

    x_sc[...] = xnew
    o_feat_ref[...] = xnew.reshape(1, B, Lp, C).astype(o_feat_ref.dtype)      # bf16 per-layer feature

    @pl.when(l_idx == pl.num_programs(1) - 1)
    def _():
        o_final_ref[...] = xnew.reshape(B, Lp, C)                             # f32 final activation


# ----------------------------- wrappers -----------------------------

def embed(patches_bf16, w_flat_bf16, base_f32, g_f32, b_f32):
    N, Lp, Kp = patches_bf16.shape
    C = w_flat_bf16.shape[1]
    return pl.pallas_call(
        _embed_kernel,
        out_shape=jax.ShapeDtypeStruct((N, Lp, C), jnp.float32),
        grid=(N,),
        in_specs=[
            pl.BlockSpec((1, Lp, Kp), lambda n: (n, 0, 0)),
            pl.BlockSpec((Kp, C), lambda n: (0, 0)),
            pl.BlockSpec((Lp, C), lambda n: (0, 0)),
            pl.BlockSpec((1, C), lambda n: (0, 0)),
            pl.BlockSpec((1, C), lambda n: (0, 0)),
        ],
        out_specs=pl.BlockSpec((1, Lp, C), lambda n: (n, 0, 0)),
        compiler_params=pltpu.CompilerParams(
            dimension_semantics=("parallel",),
            vmem_limit_bytes=_vmem_limit()),
    )(patches_bf16, w_flat_bf16, base_f32, g_f32, b_f32)


def transformer(x_seq, stacked, num_heads, *, true_len, batch_block=8):
    """All resblocks in one pallas_call: grid = (N/B, layers).

    Weights streamed once per layer per batch block and reused for B sequences.
    """
    N, Lp, C = x_seq.shape
    layers = stacked["ln1_g"].shape[0]
    B = _pick_batch_block(N, batch_block)
    names = ["ln1_g", "ln1_b", "w_qkv", "b_qkv", "w_out", "b_out",
             "ln2_g", "ln2_b", "w_fc", "b_fc", "w_proj", "b_proj"]
    ws = [stacked[k] for k in names]
    w_specs = [pl.BlockSpec((1,) + w.shape[1:],
                            lambda nb, l, nd=w.ndim: (l,) + (0,) * (nd - 1))
               for w in ws]
    feats, final = pl.pallas_call(
        functools.partial(_transformer_kernel, num_heads=num_heads, true_len=true_len),
        out_shape=(jax.ShapeDtypeStruct((layers, N, Lp, C), jnp.bfloat16),
                   jax.ShapeDtypeStruct((N, Lp, C), jnp.float32)),
        grid=(N // B, layers),
        in_specs=[pl.BlockSpec((B, Lp, C), lambda nb, l: (nb, 0, 0))] + w_specs,
        out_specs=(pl.BlockSpec((1, B, Lp, C), lambda nb, l: (l, nb, 0, 0)),
                   pl.BlockSpec((B, Lp, C), lambda nb, l: (nb, 0, 0))),
        scratch_shapes=[pltpu.VMEM((B * Lp, C), jnp.float32),
                        pltpu.VMEM((B * Lp, C), jnp.bfloat16)],
        compiler_params=pltpu.CompilerParams(
            dimension_semantics=("parallel", "arbitrary"),
            vmem_limit_bytes=_vmem_limit()),
    )(x_seq, *ws)
    return feats, final


def prepare_params(params):
    """One-time, host-side parameter transform (not part of the per-call path)."""
    p = params["patch_size"]
    width = params["width"]
    heads = params["num_heads"]
    cin = params["conv1_w"].shape[1]
    L = params["pos_emb"].shape[0]
    Lp = _round_up(L, 128)                       # lane-dense score tiles / sublane-aligned blocks
    K = cin * p * p
    Kp = _round_up(K, 128)                       # lane-aligned conv1 contraction dim

    w_flat = params["conv1_w"].reshape(width, K).T.astype(jnp.bfloat16)       # (K, C)
    w_flat = jnp.pad(w_flat, ((0, Kp - K), (0, 0)))

    base = jnp.concatenate([
        params["class_embedding"][None, :] + params["pos_emb"][0:1],
        params["pos_emb"][1:],
        jnp.zeros((Lp - L, width), jnp.float32)], axis=0)                     # (Lp, C)

    st = params["stacked"]
    scale = 1.0 / float(np.sqrt(width // heads))
    wq = (st["w_qkv"][..., :width].astype(jnp.float32) * scale).astype(st["w_qkv"].dtype)
    w_qkv = jnp.concatenate([wq, st["w_qkv"][..., width:]], axis=-1)
    b_qkv = jnp.concatenate([st["b_qkv"][..., :width] * scale,
                             st["b_qkv"][..., width:]], axis=-1)
    stacked = dict(st)
    stacked["w_qkv"] = w_qkv
    stacked["b_qkv"] = b_qkv

    return {
        "patch_size": p, "width": width, "num_heads": heads,
        "seq_len": L, "seq_len_padded": Lp, "k_dim": K, "k_dim_padded": Kp,
        "w_patch": w_flat, "embed_base": base,
        "ln_pre_g": params["ln_pre_g"], "ln_pre_b": params["ln_pre_b"],
        "stacked": stacked,
    }


def feature_extractor_forward(x, prep, batch_block=8):
    """Pallas equivalent of FeatureExtractor.forward. Returns (ClipOutput, x_LNC)."""
    N, Cin, Himg, Wimg = x.shape
    p = prep["patch_size"]
    gh, gw = Himg // p, Wimg // p
    HW = gh * gw
    L, Lp = prep["seq_len"], prep["seq_len_padded"]
    K, Kp = prep["k_dim"], prep["k_dim_padded"]
    assert L == HW + 1

    # conv1 (kernel == stride, no bias) as patch-flatten + matmul; pad the patch
    # rows so row 0 is the class-token slot and K is lane-aligned (zeros are free).
    patches = x.reshape(N, Cin, gh, p, gw, p)
    patches = patches.transpose(0, 2, 4, 1, 3, 5).reshape(N, HW, K)
    patches = jnp.pad(patches, ((0, 0), (1, Lp - L), (0, Kp - K))).astype(jnp.bfloat16)

    # TODO(synk): optionally fuse embed into the transformer's l==0 step to skip
    # the intermediate (N, Lp, C) HBM round trip.
    x_seq = embed(patches, prep["w_patch"], prep["embed_base"],
                  prep["ln_pre_g"], prep["ln_pre_b"])                          # (N, Lp, C) f32

    feats, x_last = transformer(x_seq, prep["stacked"], prep["num_heads"],
                                true_len=L, batch_block=batch_block)

    outputs = ClipOutput(spacial_shape=(gh, gw))
    outputs.save(0, x_seq)
    for i in range(feats.shape[0]):
        outputs.save(i + 1, feats[i])

    x_final = jnp.transpose(x_last[:, :L, :], (1, 0, 2))                       # (L, N, C), as PyTorch
    return outputs, x_final


# ----------------------------- pure-JAX reference -----------------------------

def _ref_ln(x, g, b, eps=1e-5):
    mu = x.mean(-1, keepdims=True)
    var = ((x - mu) ** 2).mean(-1, keepdims=True)
    return (x - mu) / jnp.sqrt(var + eps) * g + b


def _ref_resblock(x, blk, H):
    N, L, C = x.shape
    D = C // H
    f32 = lambda a: a.astype(jnp.float32)
    h = _ref_ln(x, blk["ln1_g"], blk["ln1_b"])
    qkv = h @ f32(blk["w_qkv"]) + blk["b_qkv"]
    q, k, v = qkv[..., :C], qkv[..., C:2 * C], qkv[..., 2 * C:]
    q = q.reshape(N, L, H, D)
    k = k.reshape(N, L, H, D)
    v = v.reshape(N, L, H, D)
    s = jnp.einsum("nqhd,nkhd->nhqk", q, k) / jnp.sqrt(float(D))
    p = jax.nn.softmax(s, axis=-1)
    att = jnp.einsum("nhqk,nkhd->nqhd", p, v).reshape(N, L, C)
    att = att @ f32(blk["w_out"]) + blk["b_out"]
    x = x + att
    h2 = _ref_ln(x, blk["ln2_g"], blk["ln2_b"])
    m = h2 @ f32(blk["w_fc"]) + blk["b_fc"]
    m = m * jax.nn.sigmoid(1.702 * m)
    m = m @ f32(blk["w_proj"]) + blk["b_proj"]
    return x + m


def reference_final_feature(x, params):
    N, Cin, Himg, Wimg = x.shape
    p = params["patch_size"]
    width = params["width"]
    y = jax.lax.conv_general_dilated(
        x, params["conv1_w"], window_strides=(p, p), padding="VALID",
        dimension_numbers=("NCHW", "OIHW", "NCHW"))
    _, _, h, w = y.shape
    y = y.reshape(N, width, h * w).transpose(0, 2, 1)
    cls = jnp.broadcast_to(params["class_embedding"][None, None, :], (N, 1, width))
    y = jnp.concatenate([cls, y], axis=1) + params["pos_emb"][None]
    y = _ref_ln(y, params["ln_pre_g"], params["ln_pre_b"])
    st = params["stacked"]
    for i in range(st["ln1_g"].shape[0]):
        blk = {k: v[i] for k, v in st.items()}
        y = _ref_resblock(y, blk, params["num_heads"])
    return jnp.transpose(y, (1, 0, 2))


# ----------------------------- main -----------------------------

if __name__ == "__main__":
    N, CIN, IMG, PATCH = 2, 3, 32, 4
    WIDTH, HEADS, LAYERS = 128, 4, 2        # lane-dense width (C >= 128)
    GRID = IMG // PATCH
    L = GRID * GRID + 1

    key = jax.random.PRNGKey(0)
    ks = iter(jax.random.split(key, 64))

    def nrm(shape, s=0.02):
        return s * jax.random.normal(next(ks), shape, dtype=jnp.float32)

    bf16 = jnp.bfloat16
    params = {
        "patch_size": PATCH, "width": WIDTH, "num_heads": HEADS,
        "conv1_w": nrm((WIDTH, CIN, PATCH, PATCH), 0.05),
        "class_embedding": nrm((WIDTH,), 0.05),
        "pos_emb": nrm((L, WIDTH), 0.05),
        "ln_pre_g": 1.0 + nrm((1, WIDTH), 0.01),
        "ln_pre_b": nrm((1, WIDTH), 0.01),
        # per-layer weights stacked along a leading layer axis; big matmul
        # weights stored in bf16, LN params / biases kept f32.
        "stacked": {
            "ln1_g": 1.0 + nrm((LAYERS, 1, WIDTH), 0.01),
            "ln1_b": nrm((LAYERS, 1, WIDTH), 0.01),
            "w_qkv": nrm((LAYERS, WIDTH, 3 * WIDTH), 0.05).astype(bf16),
            "b_qkv": nrm((LAYERS, 1, 3 * WIDTH), 0.01),
            "w_out": nrm((LAYERS, WIDTH, WIDTH), 0.05).astype(bf16),
            "b_out": nrm((LAYERS, 1, WIDTH), 0.01),
            "ln2_g": 1.0 + nrm((LAYERS, 1, WIDTH), 0.01),
            "ln2_b": nrm((LAYERS, 1, WIDTH), 0.01),
            "w_fc": nrm((LAYERS, WIDTH, 4 * WIDTH), 0.05).astype(bf16),
            "b_fc": nrm((LAYERS, 1, 4 * WIDTH), 0.01),
            "w_proj": nrm((LAYERS, 4 * WIDTH, WIDTH), 0.05).astype(bf16),
            "b_proj": nrm((LAYERS, 1, WIDTH), 0.01),
        },
    }

    x = jax.random.normal(next(ks), (N, CIN, IMG, IMG), dtype=jnp.float32)

    prep = prepare_params(params)                 # one-time host-side transform
    outputs, x_final = feature_extractor_forward(x, prep)
    x_final = jax.block_until_ready(x_final)

    # correctness check against a pure-JAX reference
    ref_final = reference_final_feature(x, params)
    np.testing.assert_allclose(np.asarray(x_final), np.asarray(ref_final),
                               rtol=2e-2, atol=2e-2)
    for i in range(LAYERS + 1):
        assert outputs[i].shape == (N, WIDTH, GRID, GRID)
        assert outputs[f"{i}_cls_token"].shape == (1, N, WIDTH)
    assert x_final.shape == (L, N, WIDTH)

    print("KERNEL_OK")
</pallas_src>

<mosaic_0001>
module attributes {stable_mosaic.version = 11 : i64} {
  func.func @_embed_kernel(%arg0: i32, %arg1: memref<1x128x128xbf16, #tpu.memory_space<vmem>>, %arg2: memref<128x128xbf16, #tpu.memory_space<vmem>>, %arg3: memref<128x128xf32, #tpu.memory_space<vmem>>, %arg4: memref<1x128xf32, #tpu.memory_space<vmem>>, %arg5: memref<1x128xf32, #tpu.memory_space<vmem>>, %arg6: memref<1x128x128xf32, #tpu.memory_space<vmem>>) attributes {dimension_semantics = [#tpu.dimension_semantics<parallel>], iteration_bounds = array<i64: 2>, scalar_prefetch = 0 : i64, scratch_operands = 0 : i64, tpu.core_type = #tpu.core_type<tc>, window_params = [{transform_indices = @transform_0, window_bounds = array<i64: 1, 128, 128>}, {pipeline_mode = #tpu.pipeline_mode<synchronous>, transform_indices = @transform_1, window_bounds = array<i64: 128, 128>}, {pipeline_mode = #tpu.pipeline_mode<synchronous>, transform_indices = @transform_2, window_bounds = array<i64: 128, 128>}, {pipeline_mode = #tpu.pipeline_mode<synchronous>, transform_indices = @transform_3, window_bounds = array<i64: 1, 128>}, {pipeline_mode = #tpu.pipeline_mode<synchronous>, transform_indices = @transform_4, window_bounds = array<i64: 1, 128>}, {transform_indices = @transform_5, window_bounds = array<i64: 1, 128, 128>}]} {
    %c0 = arith.constant 0 : index
    %c0_0 = arith.constant 0 : index
    %c0_1 = arith.constant 0 : index
    %0 = vector.load %arg1[%c0, %c0_0, %c0_1] : memref<1x128x128xbf16, #tpu.memory_space<vmem>>, vector<1x128x128xbf16>
    %1 = vector.shape_cast %0 : vector<1x128x128xbf16> to vector<128x128xbf16>
    %c0_2 = arith.constant 0 : index
    %c0_3 = arith.constant 0 : index
    %2 = vector.load %arg2[%c0_2, %c0_3] : memref<128x128xbf16, #tpu.memory_space<vmem>>, vector<128x128xbf16>
    %cst = arith.constant dense<0.000000e+00> : vector<128x128xf32>
    %3 = tpu.matmul %1, %2, %cst {dimension_numbers = #tpu.dot_dimension_numbers<[1], [0], [0], [1], [0, 0, 1, 1], [], []>} : vector<128x128xbf16>, vector<128x128xbf16>, vector<128x128xf32> -> vector<128x128xf32>
    %c0_4 = arith.constant 0 : index
    %c0_5 = arith.constant 0 : index
    %4 = vector.load %arg3[%c0_4, %c0_5] : memref<128x128xf32, #tpu.memory_space<vmem>>, vector<128x128xf32>
    %5 = arith.addf %3, %4 : vector<128x128xf32>
    %c0_6 = arith.constant 0 : index
    %c0_7 = arith.constant 0 : index
    %6 = vector.load %arg4[%c0_6, %c0_7] : memref<1x128xf32, #tpu.memory_space<vmem>>, vector<1x128xf32>
    %c0_8 = arith.constant 0 : index
    %c0_9 = arith.constant 0 : index
    %7 = vector.load %arg5[%c0_8, %c0_9] : memref<1x128xf32, #tpu.memory_space<vmem>>, vector<1x128xf32>
    %cst_10 = arith.constant dense<0.000000e+00> : vector<128xf32>
    %8 = vector.multi_reduction <add>, %5, %cst_10 [1] : vector<128x128xf32> to vector<128xf32>
    %9 = vector.shape_cast %8 : vector<128xf32> to vector<128x1xf32>
    %cst_11 = arith.constant 1.280000e+02 : f32
    %10 = vector.broadcast %cst_11 : f32 to vector<128x1xf32>
    %11 = arith.divf %9, %10 : vector<128x1xf32>
    %12 = vector.broadcast %11 : vector<128x1xf32> to vector<128x128xf32>
    %13 = arith.subf %5, %12 : vector<128x128xf32>
    %14 = arith.mulf %13, %13 : vector<128x128xf32>
    %cst_12 = arith.constant dense<0.000000e+00> : vector<128xf32>
    %15 = vector.multi_reduction <add>, %14, %cst_12 [1] : vector<128x128xf32> to vector<128xf32>
    %16 = vector.shape_cast %15 : vector<128xf32> to vector<128x1xf32>
    %cst_13 = arith.constant 1.280000e+02 : f32
    %17 = vector.broadcast %cst_13 : f32 to vector<128x1xf32>
    %18 = arith.divf %16, %17 : vector<128x1xf32>
    %19 = vector.broadcast %11 : vector<128x1xf32> to vector<128x128xf32>
    %20 = arith.subf %5, %19 : vector<128x128xf32>
    %cst_14 = arith.constant 9.99999974E-6 : f32
    %21 = vector.broadcast %cst_14 : f32 to vector<128x1xf32>
    %22 = arith.addf %18, %21 : vector<128x1xf32>
    %23 = math.rsqrt %22 : vector<128x1xf32>
    %24 = vector.broadcast %23 : vector<128x1xf32> to vector<128x128xf32>
    %25 = arith.mulf %20, %24 : vector<128x128xf32>
    %26 = vector.broadcast %6 : vector<1x128xf32> to vector<128x128xf32>
    %27 = arith.mulf %25, %26 : vector<128x128xf32>
    %28 = vector.broadcast %7 : vector<1x128xf32> to vector<128x128xf32>
    %29 = arith.addf %27, %28 : vector<128x128xf32>
    %c0_15 = arith.constant 0 : index
    %c0_16 = arith.constant 0 : index
    %c0_17 = arith.constant 0 : index
    %30 = vector.load %arg6[%c0_15, %c0_16, %c0_17] : memref<1x128x128xf32, #tpu.memory_space<vmem>>, vector<1x128x128xf32>
    %31 = vector.shape_cast %30 : vector<1x128x128xf32> to vector<128x128xf32>
    %32 = vector.shape_cast %29 : vector<128x128xf32> to vector<1x128x128xf32>
    tpu.vector_store %arg6[%c0_15, %c0_16, %c0_17], %32 {strides = array<i32>} : memref<1x128x128xf32, #tpu.memory_space<vmem>>, vector<1x128x128xf32>,
    return
  }
  func.func @transform_0(%arg0: i32) -> (i32, i32, i32) {
    %c0_i32 = arith.constant 0 : i32
    %c0_i32_0 = arith.constant 0 : i32
    %c0_i32_1 = arith.constant 0 : i32
    return %arg0, %c0_i32, %c0_i32_0 : i32, i32, i32
  }
  func.func @transform_1(%arg0: i32) -> (i32, i32) {
    %c0_i32 = arith.constant 0 : i32
    %c0_i32_0 = arith.constant 0 : i32
    %c0_i32_1 = arith.constant 0 : i32
    return %c0_i32, %c0_i32_0 : i32, i32
  }
  func.func @transform_2(%arg0: i32) -> (i32, i32) {
    %c0_i32 = arith.constant 0 : i32
    %c0_i32_0 = arith.constant 0 : i32
    %c0_i32_1 = arith.constant 0 : i32
    return %c0_i32, %c0_i32_0 : i32, i32
  }
  func.func @transform_3(%arg0: i32) -> (i32, i32) {
    %c0_i32 = arith.constant 0 : i32
    %c0_i32_0 = arith.constant 0 : i32
    %c0_i32_1 = arith.constant 0 : i32
    return %c0_i32, %c0_i32_0 : i32, i32
  }
  func.func @transform_4(%arg0: i32) -> (i32, i32) {
    %c0_i32 = arith.constant 0 : i32
    %c0_i32_0 = arith.constant 0 : i32
    %c0_i32_1 = arith.constant 0 : i32
    return %c0_i32, %c0_i32_0 : i32, i32
  }
  func.func @transform_5(%arg0: i32) -> (i32, i32, i32) {
    %c0_i32 = arith.constant 0 : i32
    %c0_i32_0 = arith.constant 0 : i32
    %c0_i32_1 = arith.constant 0 : i32
    return %arg0, %c0_i32, %c0_i32_0 : i32, i32, i32
  }
}

</mosaic_0001>

<llo_original>
// kernel: tpu_custom_call.1
$region0: #{tpu_custom_call.1}
  #allocation0 [shape = 'u32[]', space=smem, size = 0x4, offset = 0x4, fixed_abs, tag = 'smem constant byte address 0x4 - core index']
  #allocation1 [shape = 'u32[144,128]{1,0:T(1,128)}', space=vmem, size = 0x12000, scoped, tag = 'internal scratch']
  %s0 = inlined_call_operand.hbm [shape: bf16[2,128,128], index: 0, kind: input, shape index: {}]
  %s1 = inlined_call_operand.hbm [shape: bf16[128,128], index: 1, kind: input, shape index: {}]
  %s2 = inlined_call_operand.hbm [shape: f32[128,128], index: 2, kind: input, shape index: {}]
  %s3 = inlined_call_operand.vmem [shape: f32[1,128], index: 3, kind: input, shape index: {}]
  %s4 = inlined_call_operand.vmem [shape: f32[1,128], index: 4, kind: input, shape index: {}]
  %s5 = inlined_call_operand.hbm [shape: f32[2,128,128], index: 5, kind: output, shape index: {}]
  %s6 = sld [smem:[#allocation0]]
  $region65: #{tpu_custom_call.1} parent=0
    _
  %s8 = ssub.s32 1, %s6
  %s9 = scalar_select 0, %s8, %s6
  $region1: #{tpu_custom_call.1} parent=0
    #allocation2 [shape = 'u8[65536]{0}', space=vmem, size = 0x10000, scoped, tag = 'input window, operand 0']
    #allocation3 [shape = 's32[2]{0}', space=sflag, size = 0x8, scoped, tag = 'scoped memory for tpu_custom_call.1']
    #allocation4 [shape = 's32[2]{0}', space=sflag, size = 0x8, scoped, tag = 'scoped memory for tpu_custom_call.1']
    #allocation5 [shape = 'u8[32768]{0}', space=vmem, size = 0x8000, scoped, tag = 'input window, operand 1, single buffered']
    #allocation6 [shape = 's32[1]{0}', space=sflag, size = 0x4, scoped, tag = 'scoped memory for tpu_custom_call.1']
    #allocation7 [shape = 'u8[65536]{0}', space=vmem, size = 0x10000, scoped, tag = 'input window, operand 2, single buffered']
    #allocation8 [shape = 'u8[131072]{0}', space=vmem, size = 0x20000, scoped, tag = 'output window, operand 0']
    %10 = vsyncpa [#allocation3], 0
    %s11 = scalar_lea.sflag [#allocation3], 1
    %12 = vsyncpa %s11, 0
    %13 = vsyncpa [#allocation6], 0
    %14 = vsyncpa [#allocation4], 0
    %s15 = scalar_lea.sflag [#allocation4], 1
    %16 = vsyncpa %s15, 0
    loop: start=0, step=1, limit=4
    $region2: #{tpu_custom_call.1} parent=1 // loop_pre_header
      _
    $region3: #{tpu_custom_call.1} parent=1 // loop_header
      %s18 = sphi 0, %s22
      %p19 = scmp.ge.s32.totalorder %s18, 4
      %s28 = sphi 0, %s30
      %s31 = sphi 0, %s28
      %s32 = sphi 0, %s31
      %s48 = sphi 0, %s32
      %s52 = sphi 0, %s52
      %s54 = sphi 0, %s52
      %s55 = sphi 0, %s54
      %s69 = sphi 0, %s55
      %s73 = sphi 0, %s73
      %s75 = sphi 0, %s73
      %s76 = sphi 0, %s75
      %s90 = sphi 0, %s76
      %s94 = sphi 0, %s94
      %s96 = sphi 0, %s94
      %s97 = sphi 0, %s96
      %s111 = sphi 0, %s97
      %s115 = sphi 0, %s115
      %s117 = sphi 0, %s115
      %s118 = sphi 0, %s117
      %s132 = sphi 0, %s118
      %s138 = sphi 0, %s140
      %s141 = sphi 0, %s138
      %s142 = sphi 0, %s141
      %s158 = sphi 0, %s142
    $region4: #{tpu_custom_call.1} parent=1 // loop_header_branch
      %21 = sbr.rel (%p19) target = $region8
    $region5: #{tpu_custom_call.1} parent=1 // loop_body
      %s23 = ssub.s32 %s18, 1
      %s24 = ssub.s32 %s18, 2
      %s25 = sadd.s32 %s18, 1
      %s26 = ssub.s32 %s18, %s25
      %p27 = scmp.eq.s32.totalorder %s26, 0
      %s29 = sadd.s32 %s28, 1
      %s30 = scalar_select %p27, %s28, %s29
      %p33 = pneg %p27
      %p34 = scmp.eq.s32.totalorder %s18, 1
      %p35 = por %p33, %p34
      %p36 = scmp.ne.s32.totalorder %s28, %s31
      %p37 = scmp.eq.s32.totalorder %s18, 0
      %p38 = por %p36, %p37
      %p39 = scmp.ne.s32.totalorder %s28, %s31
      %p40 = scmp.eq.s32.totalorder %s23, 1
      %p41 = por %p39, %p40
      %p42 = scmp.ne.s32.totalorder %s31, %s32
      %p43 = scmp.eq.s32.totalorder %s23, 0
      %p44 = por %p42, %p43
      %p45 = scmp.ne.s32.totalorder %s31, %s32
      %p46 = scmp.eq.s32.totalorder %s24, 1
      %p47 = por %p45, %p46
      %p49 = scmp.ne.s32.totalorder %s32, %s48
      %p50 = scmp.eq.s32.totalorder %s24, 0
      %p51 = por %p49, %p50
      %s53 = sadd.s32 %s52, 1
      %p56 = scmp.eq.s32.totalorder %s18, 1
      %p57 = scmp.ne.s32.totalorder %s52, %s54
      %p58 = scmp.eq.s32.totalorder %s18, 0
      %p59 = por %p57, %p58
      %p60 = scmp.ne.s32.totalorder %s52, %s54
      %p61 = scmp.eq.s32.totalorder %s23, 1
      %p62 = por %p60, %p61
      %p63 = scmp.ne.s32.totalorder %s54, %s55
      %p64 = scmp.eq.s32.totalorder %s23, 0
      %p65 = por %p63, %p64
      %p66 = scmp.ne.s32.totalorder %s54, %s55
      %p67 = scmp.eq.s32.totalorder %s24, 1
      %p68 = por %p66, %p67
      %p70 = scmp.ne.s32.totalorder %s55, %s69
      %p71 = scmp.eq.s32.totalorder %s24, 0
      %p72 = por %p70, %p71
      %s74 = sadd.s32 %s73, 1
      %p77 = scmp.eq.s32.totalorder %s18, 1
      %p78 = scmp.ne.s32.totalorder %s73, %s75
      %p79 = scmp.eq.s32.totalorder %s18, 0
      %p80 = por %p78, %p79
      %p81 = scmp.ne.s32.totalorder %s73, %s75
      %p82 = scmp.eq.s32.totalorder %s23, 1
      %p83 = por %p81, %p82
      %p84 = scmp.ne.s32.totalorder %s75, %s76
      %p85 = scmp.eq.s32.totalorder %s23, 0
      %p86 = por %p84, %p85
      %p87 = scmp.ne.s32.totalorder %s75, %s76
      %p88 = scmp.eq.s32.totalorder %s24, 1
      %p89 = por %p87, %p88
      %p91 = scmp.ne.s32.totalorder %s76, %s90
      %p92 = scmp.eq.s32.totalorder %s24, 0
      %p93 = por %p91, %p92
      %s95 = sadd.s32 %s94, 1
      %p98 = scmp.eq.s32.totalorder %s18, 1
      %p99 = scmp.ne.s32.totalorder %s94, %s96
      %p100 = scmp.eq.s32.totalorder %s18, 0
      %p101 = por %p99, %p100
      %p102 = scmp.ne.s32.totalorder %s94, %s96
      %p103 = scmp.eq.s32.totalorder %s23, 1
      %p104 = por %p102, %p103
      %p105 = scmp.ne.s32.totalorder %s96, %s97
      %p106 = scmp.eq.s32.totalorder %s23, 0
      %p107 = por %p105, %p106
      %p108 = scmp.ne.s32.totalorder %s96, %s97
      %p109 = scmp.eq.s32.totalorder %s24, 1
      %p110 = por %p108, %p109
      %p112 = scmp.ne.s32.totalorder %s97, %s111
      %p113 = scmp.eq.s32.totalorder %s24, 0
      %p114 = por %p112, %p113
      %s116 = sadd.s32 %s115, 1
      %p119 = scmp.eq.s32.totalorder %s18, 1
      %p120 = scmp.ne.s32.totalorder %s115, %s117
      %p121 = scmp.eq.s32.totalorder %s18, 0
      %p122 = por %p120, %p121
      %p123 = scmp.ne.s32.totalorder %s115, %s117
      %p124 = scmp.eq.s32.totalorder %s23, 1
      %p125 = por %p123, %p124
      %p126 = scmp.ne.s32.totalorder %s117, %s118
      %p127 = scmp.eq.s32.totalorder %s23, 0
      %p128 = por %p126, %p127
      %p129 = scmp.ne.s32.totalorder %s117, %s118
      %p130 = scmp.eq.s32.totalorder %s24, 1
      %p131 = por %p129, %p130
      %p133 = scmp.ne.s32.totalorder %s118, %s132
      %p134 = scmp.eq.s32.totalorder %s24, 0
      %p135 = por %p133, %p134
      %s136 = ssub.s32 %s18, %s25
      %p137 = scmp.eq.s32.totalorder %s136, 0
      %s139 = sadd.s32 %s138, 1
      %s140 = scalar_select %p137, %s138, %s139
      %p143 = pneg %p137
      %p144 = scmp.eq.s32.totalorder %s18, 1
      %p145 = por %p143, %p144
      %p146 = scmp.ne.s32.totalorder %s138, %s141
      %p147 = scmp.eq.s32.totalorder %s18, 0
      %p148 = por %p146, %p147
      %p149 = scmp.ne.s32.totalorder %s138, %s141
      %p150 = scmp.eq.s32.totalorder %s23, 1
      %p151 = por %p149, %p150
      %p152 = scmp.ne.s32.totalorder %s141, %s142
      %p153 = scmp.eq.s32.totalorder %s23, 0
      %p154 = por %p152, %p153
      %p155 = scmp.ne.s32.totalorder %s141, %s142
      %p156 = scmp.eq.s32.totalorder %s24, 1
      %p157 = por %p155, %p156
      %p159 = scmp.ne.s32.totalorder %s142, %s158
      %p160 = scmp.eq.s32.totalorder %s24, 0
      %p161 = por %p159, %p160
      %p162 = scmp.le.s32.totalorder 1, %s18
      %p163 = scmp.lt.s32.totalorder %s18, 3
      %p164 = pnand %p162, %p163
      %p165 = pneg %p164
      // Predicated region
      $region9: #{tpu_custom_call.1} parent=5 // pred_check
        _
      $region10: #{tpu_custom_call.1} parent=5 // pred_check_branch
        %167 = sbr.rel (%p164) target = $region12
      $region11: #{tpu_custom_call.1} parent=5 // pred_region
        %s168 = ssub.s32 %s18, 1
        // Predicated region
        $region13: #{tpu_custom_call.1} parent=11 // pred_check
          %p169 = pneg %p65
        $region14: #{tpu_custom_call.1} parent=11 // pred_check_branch
          %171 = sbr.rel (%p169) target = $region16
        $region15: #{tpu_custom_call.1} parent=11 // pred_region
          %s173 = ssub.s32 1024, 1024
          %174 = vsyncadd [#allocation6], %s173
          %s175 = sshll.u32 [#allocation5], 4
          %s176 = int_to_ptr.vmem [resolvable:$true] %s175
          %181 = dma.hbm_to_vmem [thread:$0]  %s1, 1024, %s176, [#allocation6], 64, 64, 4
        $region16: #{tpu_custom_call.1} parent=11 // pred_fallthru
          _
        // Predicated region
        $region17: #{tpu_custom_call.1} parent=11 // pred_check
          %p182 = pneg %p86
        $region18: #{tpu_custom_call.1} parent=11 // pred_check_branch
          %184 = sbr.rel (%p182) target = $region20
        $region19: #{tpu_custom_call.1} parent=11 // pred_region
          %s186 = ssub.s32 2048, 2048
          %187 = vsyncadd [#allocation6], %s186
          %s188 = sshll.u32 [#allocation7], 4
          %s189 = int_to_ptr.vmem [resolvable:$true] %s188
          %194 = dma.hbm_to_vmem [thread:$0]  %s2, 2048, %s189, [#allocation6], 128, 128, 8
        $region20: #{tpu_custom_call.1} parent=11 // pred_fallthru
          _
        // Predicated region
        $region21: #{tpu_custom_call.1} parent=11 // pred_check
          %p195 = pneg %p107
        $region22: #{tpu_custom_call.1} parent=11 // pred_check_branch
          %197 = sbr.rel (%p195) target = $region24
        $region23: #{tpu_custom_call.1} parent=11 // pred_region
          _
        $region24: #{tpu_custom_call.1} parent=11 // pred_fallthru
          _
        // Predicated region
        $region25: #{tpu_custom_call.1} parent=11 // pred_check
          %p198 = pneg %p128
        $region26: #{tpu_custom_call.1} parent=11 // pred_check_branch
          %200 = sbr.rel (%p198) target = $region28
        $region27: #{tpu_custom_call.1} parent=11 // pred_region
          _
        $region28: #{tpu_custom_call.1} parent=11 // pred_fallthru
          _
      $region12: #{tpu_custom_call.1} parent=5 // pred_fallthru
        _
      %p201 = scmp.lt.s32.totalorder %s18, 2
      // Predicated region
      $region29: #{tpu_custom_call.1} parent=5 // pred_check
        %p202 = pneg %p201
      $region30: #{tpu_custom_call.1} parent=5 // pred_check_branch
        %204 = sbr.rel (%p202) target = $region32
      $region31: #{tpu_custom_call.1} parent=5 // pred_region
        // Predicated region
        $region33: #{tpu_custom_call.1} parent=31 // pred_check
          %p205 = pneg %p38
        $region34: #{tpu_custom_call.1} parent=31 // pred_check_branch
          %207 = sbr.rel (%p205) target = $region36
        $region35: #{tpu_custom_call.1} parent=31 // pred_region
          %s208 = sand.u32 %s28, 1
          %s209 = scalar_lea.sflag [#allocation3], %s208
          %s210 = sand.u32 %s28, 1
          %s211 = smul.addr %s210, 64
          %s212 = scalar_lea.vmem [#allocation2], %s211
          %s214 = ssub.s32 1024, 1024
          %215 = vsyncadd %s209, %s214
          %s216 = smul.addr %s18, 16
          %s217 = smul.addr %s216, 64
          %s218 = scalar_lea.hbm %s0, %s217
          %s219 = sshll.u32 %s212, 4
          %s220 = int_to_ptr.vmem [resolvable:$true] %s219
          %225 = dma.hbm_to_vmem [thread:$0]  %s218, 1024, %s220, %s209, 64, 64, 4
        $region36: #{tpu_custom_call.1} parent=31 // pred_fallthru
          _
      $region32: #{tpu_custom_call.1} parent=5 // pred_fallthru
        _
      %p226 = scmp.le.s32.totalorder 1, %s18
      %p227 = scmp.lt.s32.totalorder %s18, 3
      %p228 = pnand %p226, %p227
      %p229 = pneg %p228
      // Predicated region
      $region37: #{tpu_custom_call.1} parent=5 // pred_check
        _
      $region38: #{tpu_custom_call.1} parent=5 // pred_check_branch
        %231 = sbr.rel (%p228) target = $region40
      $region39: #{tpu_custom_call.1} parent=5 // pred_region
        %s232 = ssub.s32 %s18, 1
        %s233 = sand.u32 %s31, 1
        %s234 = scalar_lea.sflag [#allocation3], %s233
        %s235 = sand.u32 %s31, 1
        %s236 = smul.addr %s235, 64
        %s237 = scalar_lea.vmem [#allocation2], %s236
        // Predicated region
        $region41: #{tpu_custom_call.1} parent=39 // pred_check
          %p238 = pneg %p44
        $region42: #{tpu_custom_call.1} parent=39 // pred_check_branch
          %240 = sbr.rel (%p238) target = $region44
        $region43: #{tpu_custom_call.1} parent=39 // pred_region
          %241 = dma.done %s234, 1024
        $region44: #{tpu_custom_call.1} parent=39 // pred_fallthru
          _
        // Predicated region
        $region45: #{tpu_custom_call.1} parent=39 // pred_check
          %p242 = pneg %p65
        $region46: #{tpu_custom_call.1} parent=39 // pred_check_branch
          %244 = sbr.rel (%p242) target = $region48
        $region47: #{tpu_custom_call.1} parent=39 // pred_region
          %245 = dma.done [#allocation6], 1024
        $region48: #{tpu_custom_call.1} parent=39 // pred_fallthru
          _
        // Predicated region
        $region49: #{tpu_custom_call.1} parent=39 // pred_check
          %p246 = pneg %p86
        $region50: #{tpu_custom_call.1} parent=39 // pred_check_branch
          %248 = sbr.rel (%p246) target = $region52
        $region51: #{tpu_custom_call.1} parent=39 // pred_region
          %249 = dma.done [#allocation6], 2048
        $region52: #{tpu_custom_call.1} parent=39 // pred_fallthru
          _
        %s250 = sand.u32 %s31, 1
        %s251 = scalar_lea.sflag [#allocation3], %s250
        %s252 = sand.u32 %s31, 1
        %s253 = smul.addr %s252, 64
        %s254 = scalar_lea.vmem [#allocation2], %s253
        %p255 = pneg %p44
        %p256 = pneg %p41
        %p257 = pneg %p65
        %p258 = pneg %p62
        %p259 = pneg %p86
        %p260 = pneg %p83
        %p261 = pneg %p107
        %p262 = pneg %p104
        %p263 = pneg %p128
        %p264 = pneg %p125
        %p265 = pneg %p154
        %p266 = pneg %p151
        %s267 = sand.u32 %s141, 1
        %s268 = scalar_lea.sflag [#allocation4], %s267
        %s269 = sand.u32 %s141, 1
        %s270 = smul.addr %s269, 128
        %s271 = scalar_lea.vmem [#allocation8], %s270
        %v273 = vld [vmem:[%s237] sm:$0xf]
        %v274 = vld [vmem:[%s237 + $0x4] sm:$0xf]
        %v275 = vld [vmem:[%s237 + $0x8] sm:$0xf]
        %v276 = vld [vmem:[%s237 + $0xc] sm:$0xf]
        %v277 = vld [vmem:[%s237 + $0x10] sm:$0xf]
        %v278 = vld [vmem:[%s237 + $0x14] sm:$0xf]
        %v279 = vld [vmem:[%s237 + $0x18] sm:$0xf]
        %v280 = vld [vmem:[%s237 + $0x1c] sm:$0xf]
        %v281 = vld [vmem:[%s237 + $0x20] sm:$0xf]
        %v282 = vld [vmem:[%s237 + $0x24] sm:$0xf]
        %v283 = vld [vmem:[%s237 + $0x28] sm:$0xf]
        %v284 = vld [vmem:[%s237 + $0x2c] sm:$0xf]
        %v285 = vld [vmem:[%s237 + $0x30] sm:$0xf]
        %v286 = vld [vmem:[%s237 + $0x34] sm:$0xf]
        %v287 = vld [vmem:[%s237 + $0x38] sm:$0xf]
        %v288 = vld [vmem:[%s237 + $0x3c] sm:$0xf]
        %v289 = vld [vmem:[#allocation5] sm:$0xf]
        %v290 = vld [vmem:[#allocation5 + $0x4] sm:$0xf]
        %v291 = vld [vmem:[#allocation5 + $0x8] sm:$0xf]
        %v292 = vld [vmem:[#allocation5 + $0xc] sm:$0xf]
        %v293 = vld [vmem:[#allocation5 + $0x10] sm:$0xf]
        %v294 = vld [vmem:[#allocation5 + $0x14] sm:$0xf]
        %v295 = vld [vmem:[#allocation5 + $0x18] sm:$0xf]
        %v296 = vld [vmem:[#allocation5 + $0x1c] sm:$0xf]
        %v297 = vld [vmem:[#allocation5 + $0x20] sm:$0xf]
        %v298 = vld [vmem:[#allocation5 + $0x24] sm:$0xf]
        %v299 = vld [vmem:[#allocation5 + $0x28] sm:$0xf]
        %v300 = vld [vmem:[#allocation5 + $0x2c] sm:$0xf]
        %v301 = vld [vmem:[#allocation5 + $0x30] sm:$0xf]
        %v302 = vld [vmem:[#allocation5 + $0x34] sm:$0xf]
        %v303 = vld [vmem:[#allocation5 + $0x38] sm:$0xf]
        %v304 = vld [vmem:[#allocation5 + $0x3c] sm:$0xf]
        %v305 = vld [vmem:[#allocation7] sm:$0xff]
        %v306 = vld [vmem:[#allocation7 + $0x8] sm:$0xff]
        %v307 = vld [vmem:[#allocation7 + $0x10] sm:$0xff]
        %v308 = vld [vmem:[#allocation7 + $0x18] sm:$0xff]
        %v309 = vld [vmem:[#allocation7 + $0x20] sm:$0xff]
        %v310 = vld [vmem:[#allocation7 + $0x28] sm:$0xff]
        %v311 = vld [vmem:[#allocation7 + $0x30] sm:$0xff]
        %v312 = vld [vmem:[#allocation7 + $0x38] sm:$0xff]
        %v313 = vld [vmem:[#allocation7 + $0x40] sm:$0xff]
        %v314 = vld [vmem:[#allocation7 + $0x48] sm:$0xff]
        %v315 = vld [vmem:[#allocation7 + $0x50] sm:$0xff]
        %v316 = vld [vmem:[#allocation7 + $0x58] sm:$0xff]
        %v317 = vld [vmem:[#allocation7 + $0x60] sm:$0xff]
        %v318 = vld [vmem:[#allocation7 + $0x68] sm:$0xff]
        %v319 = vld [vmem:[#allocation7 + $0x70] sm:$0xff]
        %v320 = vld [vmem:[#allocation7 + $0x78] sm:$0xff]
        %v337 = vunpack.c.l.b16 %v273
        %v338 = vunpack.c.l.b16 %v274
        %v339 = vunpack.c.l.b16 %v275
        %v340 = vunpack.c.l.b16 %v276
        %v341 = vunpack.c.l.b16 %v277
        %v342 = vunpack.c.l.b16 %v278
        %v343 = vunpack.c.l.b16 %v279
        %v344 = vunpack.c.l.b16 %v280
        %v345 = vunpack.c.l.b16 %v281
        %v346 = vunpack.c.l.b16 %v282
        %v347 = vunpack.c.l.b16 %v283
        %v348 = vunpack.c.l.b16 %v284
        %v349 = vunpack.c.l.b16 %v285
        %v350 = vunpack.c.l.b16 %v286
        %v351 = vunpack.c.l.b16 %v287
        %v352 = vunpack.c.l.b16 %v288
        %v353 = vpack.c.b16 %v338, %v337
        %v354 = vpack.c.b16 %v340, %v339
        %v355 = vpack.c.b16 %v342, %v341
        %v356 = vpack.c.b16 %v344, %v343
        %v357 = vpack.c.b16 %v346, %v345
        %v358 = vpack.c.b16 %v348, %v347
        %v359 = vpack.c.b16 %v350, %v349
        %v360 = vpack.c.b16 %v352, %v351
        %v385 = vunpack.c.l.b16 %v289
        %v386 = vunpack.c.l.b16 %v290
        %v387 = vunpack.c.l.b16 %v291
        %v388 = vunpack.c.l.b16 %v292
        %v389 = vunpack.c.l.b16 %v293
        %v390 = vunpack.c.l.b16 %v294
        %v391 = vunpack.c.l.b16 %v295
        %v392 = vunpack.c.l.b16 %v296
        %v393 = vunpack.c.l.b16 %v297
        %v394 = vunpack.c.l.b16 %v298
        %v395 = vunpack.c.l.b16 %v299
        %v396 = vunpack.c.l.b16 %v300
        %v397 = vunpack.c.l.b16 %v301
        %v398 = vunpack.c.l.b16 %v302
        %v399 = vunpack.c.l.b16 %v303
        %v400 = vunpack.c.l.b16 %v304
        %v401 = vpack.c.b16 %v386, %v385
        %v402 = vpack.c.b16 %v388, %v387
        %v403 = vpack.c.b16 %v390, %v389
        %v404 = vpack.c.b16 %v392, %v391
        %v405 = vpack.c.b16 %v394, %v393
        %v406 = vpack.c.b16 %v396, %v395
        %v407 = vpack.c.b16 %v398, %v397
        %v408 = vpack.c.b16 %v400, %v399
        %417 = vmatprep.subr.bf16.mxu0 0
        %418 = vmatpush1.bf16.msra.mxu0 %v408
        %419 = vmatprep.subr.bf16.mxu0 0
        %420 = vmatpush1.bf16.msra.mxu0 %v407
        %421 = vmatprep.subr.bf16.mxu0 0
        %422 = vmatpush1.bf16.msra.mxu0 %v406
        %423 = vmatprep.subr.bf16.mxu0 0
        %424 = vmatpush1.bf16.msra.mxu0 %v405
        %425 = vmatprep.subr.bf16.mxu0 0
        %426 = vmatpush1.bf16.msra.mxu0 %v404
        %427 = vmatprep.subr.bf16.mxu0 0
        %428 = vmatpush1.bf16.msra.mxu0 %v403
        %429 = vmatprep.subr.bf16.mxu0 0
        %430 = vmatpush1.bf16.msra.mxu0 %v402
        %431 = vmatprep.subr.bf16.mxu0 0
        %432 = vmatpush1.bf16.msra.mxu0 %v401
        %433 = vmatprep.subr.bf16.mxu0 0
        %434 = vmatpush2.bf16.msra.mxu0 0
        %435 = vmatprep.subr.bf16.mxu0 0
        %436 = vmatpush2.bf16.msra.mxu0 0
        %437 = vmatprep.subr.bf16.mxu0 0
        %438 = vmatpush2.bf16.msra.mxu0 0
        %439 = vmatprep.subr.bf16.mxu0 0
        %440 = vmatpush2.bf16.msra.mxu0 0
        %441 = vmatprep.subr.bf16.mxu0 0
        %442 = vmatpush2.bf16.msra.mxu0 0
        %443 = vmatprep.subr.bf16.mxu0 0
        %444 = vmatpush2.bf16.msra.mxu0 0
        %445 = vmatprep.subr.bf16.mxu0 0
        %446 = vmatpush2.bf16.msra.mxu0 0
        %447 = vmatprep.subr.bf16.mxu0 0
        %448 = vmatpush2.bf16.msra.mxu0 0
        %449 = vmatprep.mubr.bf16.mxu0 0
        %450 = vmatmul.mubr.bf16.gmra.mxu0 %v353
        %v451 = vpop.f32.mrf.mxu0
        %v452 = vadd.f32 %v305, %v451
        %v453 = vpop.f32.mrf.mxu0
        %v454 = vpop.f32.mrf.mxu0
        %v455 = vadd.f32 %v306, %v454
        %v456 = vpop.f32.mrf.mxu0
        %457 = vmatprep.mubr.bf16.mxu0 0
        %458 = vmatmul.mubr.bf16.gmra.mxu0 %v354
        %v459 = vpop.f32.mrf.mxu0
        %v460 = vadd.f32 %v307, %v459
        %v461 = vpop.f32.mrf.mxu0
        %v462 = vpop.f32.mrf.mxu0
        %v463 = vadd.f32 %v308, %v462
        %v464 = vpop.f32.mrf.mxu0
        %465 = vmatprep.mubr.bf16.mxu0 0
        %466 = vmatmul.mubr.bf16.gmra.mxu0 %v355
        %v467 = vpop.f32.mrf.mxu0
        %v468 = vadd.f32 %v309, %v467
        %v469 = vpop.f32.mrf.mxu0
        %v470 = vpop.f32.mrf.mxu0
        %v471 = vadd.f32 %v310, %v470
        %v472 = vpop.f32.mrf.mxu0
        %473 = vmatprep.mubr.bf16.mxu0 0
        %474 = vmatmul.mubr.bf16.gmra.mxu0 %v356
        %v475 = vpop.f32.mrf.mxu0
        %v476 = vadd.f32 %v311, %v475
        %v477 = vpop.f32.mrf.mxu0
        %v478 = vpop.f32.mrf.mxu0
        %v479 = vadd.f32 %v312, %v478
        %v480 = vpop.f32.mrf.mxu0
        %481 = vmatprep.mubr.bf16.mxu0 0
        %482 = vmatmul.mubr.bf16.gmra.mxu0 %v357
        %v483 = vpop.f32.mrf.mxu0
        %v484 = vadd.f32 %v313, %v483
        %v485 = vpop.f32.mrf.mxu0
        %v486 = vpop.f32.mrf.mxu0
        %v487 = vadd.f32 %v314, %v486
        %v488 = vpop.f32.mrf.mxu0
        %489 = vmatprep.mubr.bf16.mxu0 0
        %490 = vmatmul.mubr.bf16.gmra.mxu0 %v358
        %v491 = vpop.f32.mrf.mxu0
        %v492 = vadd.f32 %v315, %v491
        %v493 = vpop.f32.mrf.mxu0
        %v494 = vpop.f32.mrf.mxu0
        %v495 = vadd.f32 %v316, %v494
        %v496 = vpop.f32.mrf.mxu0
        %497 = vmatprep.mubr.bf16.mxu0 0
        %498 = vmatmul.mubr.bf16.gmra.mxu0 %v359
        %v499 = vpop.f32.mrf.mxu0
        %v500 = vadd.f32 %v317, %v499
        %v501 = vpop.f32.mrf.mxu0
        %v502 = vpop.f32.mrf.mxu0
        %v503 = vadd.f32 %v318, %v502
        %v504 = vpop.f32.mrf.mxu0
        %505 = vmatprep.mubr.bf16.mxu0 0
        %506 = vmatmul.mubr.bf16.gmra.mxu0 %v360
        %v507 = vpop.f32.mrf.mxu0
        %v508 = vadd.f32 %v319, %v507
        %v509 = vpop.f32.mrf.mxu0
        %v510 = vpop.f32.mrf.mxu0
        %v511 = vadd.f32 %v320, %v510
        %v512 = vpop.f32.mrf.mxu0
        %513 = vdwg.mxu0
        %v514 = vld [vmem:[%s3] sm:$0x1]
        %v515 = vld [vmem:[%s4] sm:$0x1]
        %516 = vadd.xlane.f32.xlu0 %v452
        %v517 = vpop.xlane.xlu0 %516
        %518 = vadd.xlane.f32.xlu0 %v455
        %v519 = vpop.xlane.xlu0 %518
        %520 = vadd.xlane.f32.xlu0 %v460
        %v521 = vpop.xlane.xlu0 %520
        %522 = vadd.xlane.f32.xlu0 %v463
        %v523 = vpop.xlane.xlu0 %522
        %524 = vadd.xlane.f32.xlu0 %v468
        %v525 = vpop.xlane.xlu0 %524
        %526 = vadd.xlane.f32.xlu0 %v471
        %v527 = vpop.xlane.xlu0 %526
        %528 = vadd.xlane.f32.xlu0 %v476
        %v529 = vpop.xlane.xlu0 %528
        %530 = vadd.xlane.f32.xlu0 %v479
        %v531 = vpop.xlane.xlu0 %530
        %532 = vadd.xlane.f32.xlu0 %v484
        %v533 = vpop.xlane.xlu0 %532
        %534 = vadd.xlane.f32.xlu0 %v487
        %v535 = vpop.xlane.xlu0 %534
        %536 = vadd.xlane.f32.xlu0 %v492
        %v537 = vpop.xlane.xlu0 %536
        %538 = vadd.xlane.f32.xlu0 %v495
        %v539 = vpop.xlane.xlu0 %538
        %540 = vadd.xlane.f32.xlu0 %v500
        %v541 = vpop.xlane.xlu0 %540
        %542 = vadd.xlane.f32.xlu0 %v503
        %v543 = vpop.xlane.xlu0 %542
        %544 = vadd.xlane.f32.xlu0 %v508
        %v545 = vpop.xlane.xlu0 %544
        %546 = vadd.xlane.f32.xlu0 %v511
        %v547 = vpop.xlane.xlu0 %546
        %v548 = vrcp.pop 128.0
        %v549 = vmul.f32 %v517, %v548
        %v550 = vmul.f32 %v519, %v548
        %v551 = vmul.f32 %v521, %v548
        %v552 = vmul.f32 %v523, %v548
        %v553 = vmul.f32 %v525, %v548
        %v554 = vmul.f32 %v527, %v548
        %v555 = vmul.f32 %v529, %v548
        %v556 = vmul.f32 %v531, %v548
        %v557 = vmul.f32 %v533, %v548
        %v558 = vmul.f32 %v535, %v548
        %v559 = vmul.f32 %v537, %v548
        %v560 = vmul.f32 %v539, %v548
        %v561 = vmul.f32 %v541, %v548
        %v562 = vmul.f32 %v543, %v548
        %v563 = vmul.f32 %v545, %v548
        %v564 = vmul.f32 %v547, %v548
        %v565 = vsub.f32 %v452, %v549
        %v566 = vsub.f32 %v455, %v550
        %v567 = vsub.f32 %v460, %v551
        %v568 = vsub.f32 %v463, %v552
        %v569 = vsub.f32 %v468, %v553
        %v570 = vsub.f32 %v471, %v554
        %v571 = vsub.f32 %v476, %v555
        %v572 = vsub.f32 %v479, %v556
        %v573 = vsub.f32 %v484, %v557
        %v574 = vsub.f32 %v487, %v558
        %v575 = vsub.f32 %v492, %v559
        %v576 = vsub.f32 %v495, %v560
        %v577 = vsub.f32 %v500, %v561
        %v578 = vsub.f32 %v503, %v562
        %v579 = vsub.f32 %v508, %v563
        %v580 = vsub.f32 %v511, %v564
        %v581 = vmul.f32 %v565, %v565
        %v582 = vmul.f32 %v566, %v566
        %v583 = vmul.f32 %v567, %v567
        %v584 = vmul.f32 %v568, %v568
        %v585 = vmul.f32 %v569, %v569
        %v586 = vmul.f32 %v570, %v570
        %v587 = vmul.f32 %v571, %v571
        %v588 = vmul.f32 %v572, %v572
        %v589 = vmul.f32 %v573, %v573
        %v590 = vmul.f32 %v574, %v574
        %v591 = vmul.f32 %v575, %v575
        %v592 = vmul.f32 %v576, %v576
        %v593 = vmul.f32 %v577, %v577
        %v594 = vmul.f32 %v578, %v578
        %v595 = vmul.f32 %v579, %v579
        %v596 = vmul.f32 %v580, %v580
        %597 = vadd.xlane.f32.xlu0 %v581
        %v598 = vpop.xlane.xlu0 %597
        %599 = vadd.xlane.f32.xlu0 %v582
        %v600 = vpop.xlane.xlu0 %599
        %601 = vadd.xlane.f32.xlu0 %v583
        %v602 = vpop.xlane.xlu0 %601
        %603 = vadd.xlane.f32.xlu0 %v584
        %v604 = vpop.xlane.xlu0 %603
        %605 = vadd.xlane.f32.xlu0 %v585
        %v606 = vpop.xlane.xlu0 %605
        %607 = vadd.xlane.f32.xlu0 %v586
        %v608 = vpop.xlane.xlu0 %607
        %609 = vadd.xlane.f32.xlu0 %v587
        %v610 = vpop.xlane.xlu0 %609
        %611 = vadd.xlane.f32.xlu0 %v588
        %v612 = vpop.xlane.xlu0 %611
        %613 = vadd.xlane.f32.xlu0 %v589
        %v614 = vpop.xlane.xlu0 %613
        %615 = vadd.xlane.f32.xlu0 %v590
        %v616 = vpop.xlane.xlu0 %615
        %617 = vadd.xlane.f32.xlu0 %v591
        %v618 = vpop.xlane.xlu0 %617
        %619 = vadd.xlane.f32.xlu0 %v592
        %v620 = vpop.xlane.xlu0 %619
        %621 = vadd.xlane.f32.xlu0 %v593
        %v622 = vpop.xlane.xlu0 %621
        %623 = vadd.xlane.f32.xlu0 %v594
        %v624 = vpop.xlane.xlu0 %623
        %625 = vadd.xlane.f32.xlu0 %v595
        %v626 = vpop.xlane.xlu0 %625
        %627 = vadd.xlane.f32.xlu0 %v596
        %v628 = vpop.xlane.xlu0 %627
        %v629 = vmul.f32 %v598, %v548
        %v630 = vmul.f32 %v600, %v548
        %v631 = vmul.f32 %v602, %v548
        %v632 = vmul.f32 %v604, %v548
        %v633 = vmul.f32 %v606, %v548
        %v634 = vmul.f32 %v608, %v548
        %v635 = vmul.f32 %v610, %v548
        %v636 = vmul.f32 %v612, %v548
        %v637 = vmul.f32 %v614, %v548
        %v638 = vmul.f32 %v616, %v548
        %v639 = vmul.f32 %v618, %v548
        %v640 = vmul.f32 %v620, %v548
        %v641 = vmul.f32 %v622, %v548
        %v642 = vmul.f32 %v624, %v548
        %v643 = vmul.f32 %v626, %v548
        %v644 = vmul.f32 %v628, %v548
        %v645 = vadd.f32 %v629, 1e-05
        %v646 = vadd.f32 %v630, 1e-05
        %v647 = vadd.f32 %v631, 1e-05
        %v648 = vadd.f32 %v632, 1e-05
        %v649 = vadd.f32 %v633, 1e-05
        %v650 = vadd.f32 %v634, 1e-05
        %v651 = vadd.f32 %v635, 1e-05
        %v652 = vadd.f32 %v636, 1e-05
        %v653 = vadd.f32 %v637, 1e-05
        %v654 = vadd.f32 %v638, 1e-05
        %v655 = vadd.f32 %v639, 1e-05
        %v656 = vadd.f32 %v640, 1e-05
        %v657 = vadd.f32 %v641, 1e-05
        %v658 = vadd.f32 %v642, 1e-05
        %v659 = vadd.f32 %v643, 1e-05
        %v660 = vadd.f32 %v644, 1e-05
        %v661 = vrsqrt.pop %v645
        %v662 = vrsqrt.pop %v646
        %v663 = vrsqrt.pop %v647
        %v664 = vrsqrt.pop %v648
        %v665 = vrsqrt.pop %v649
        %v666 = vrsqrt.pop %v650
        %v667 = vrsqrt.pop %v651
        %v668 = vrsqrt.pop %v652
        %v669 = vrsqrt.pop %v653
        %v670 = vrsqrt.pop %v654
        %v671 = vrsqrt.pop %v655
        %v672 = vrsqrt.pop %v656
        %v673 = vrsqrt.pop %v657
        %v674 = vrsqrt.pop %v658
        %v675 = vrsqrt.pop %v659
        %v676 = vrsqrt.pop %v660
        %v677 = vmul.f32 %v565, %v661
        %v678 = vmul.f32 %v566, %v662
        %v679 = vmul.f32 %v567, %v663
        %v680 = vmul.f32 %v568, %v664
        %v681 = vmul.f32 %v569, %v665
        %v682 = vmul.f32 %v570, %v666
        %v683 = vmul.f32 %v571, %v667
        %v684 = vmul.f32 %v572, %v668
        %v685 = vmul.f32 %v573, %v669
        %v686 = vmul.f32 %v574, %v670
        %v687 = vmul.f32 %v575, %v671
        %v688 = vmul.f32 %v576, %v672
        %v689 = vmul.f32 %v577, %v673
        %v690 = vmul.f32 %v578, %v674
        %v691 = vmul.f32 %v579, %v675
        %v692 = vmul.f32 %v580, %v676
        %v694 = vlaneseq
        %v695 = vshrl.u32 %v694, 7
        %v696 = vsub.s32 0, %v695
        %v697 = vrot.slane %v514, %v696
        %v699 = vmul.f32 %v677, %v697
        %v700 = vmul.f32 %v678, %v697
        %v701 = vmul.f32 %v679, %v697
        %v702 = vmul.f32 %v680, %v697
        %v703 = vmul.f32 %v681, %v697
        %v704 = vmul.f32 %v682, %v697
        %v705 = vmul.f32 %v683, %v697
        %v706 = vmul.f32 %v684, %v697
        %v707 = vmul.f32 %v685, %v697
        %v708 = vmul.f32 %v686, %v697
        %v709 = vmul.f32 %v687, %v697
        %v710 = vmul.f32 %v688, %v697
        %v711 = vmul.f32 %v689, %v697
        %v712 = vmul.f32 %v690, %v697
        %v713 = vmul.f32 %v691, %v697
        %v714 = vmul.f32 %v692, %v697
        %v716 = vlaneseq
        %v717 = vshrl.u32 %v716, 7
        %v718 = vsub.s32 0, %v717
        %v719 = vrot.slane %v515, %v718
        %v721 = vadd.f32 %v699, %v719
        %v722 = vadd.f32 %v700, %v719
        %v723 = vadd.f32 %v701, %v719
        %v724 = vadd.f32 %v702, %v719
        %v725 = vadd.f32 %v703, %v719
        %v726 = vadd.f32 %v704, %v719
        %v727 = vadd.f32 %v705, %v719
        %v728 = vadd.f32 %v706, %v719
        %v729 = vadd.f32 %v707, %v719
        %v730 = vadd.f32 %v708, %v719
        %v731 = vadd.f32 %v709, %v719
        %v732 = vadd.f32 %v710, %v719
        %v733 = vadd.f32 %v711, %v719
        %v734 = vadd.f32 %v712, %v719
        %v735 = vadd.f32 %v713, %v719
        %v736 = vadd.f32 %v714, %v719
        %737 = vst [vmem:[%s271] sm:$0xff] %v721
        %738 = vst [vmem:[%s271 + $0x8] sm:$0xff] %v722
        %739 = vst [vmem:[%s271 + $0x10] sm:$0xff] %v723
        %740 = vst [vmem:[%s271 + $0x18] sm:$0xff] %v724
        %741 = vst [vmem:[%s271 + $0x20] sm:$0xff] %v725
        %742 = vst [vmem:[%s271 + $0x28] sm:$0xff] %v726
        %743 = vst [vmem:[%s271 + $0x30] sm:$0xff] %v727
        %744 = vst [vmem:[%s271 + $0x38] sm:$0xff] %v728
        %745 = vst [vmem:[%s271 + $0x40] sm:$0xff] %v729
        %746 = vst [vmem:[%s271 + $0x48] sm:$0xff] %v730
        %747 = vst [vmem:[%s271 + $0x50] sm:$0xff] %v731
        %748 = vst [vmem:[%s271 + $0x58] sm:$0xff] %v732
        %749 = vst [vmem:[%s271 + $0x60] sm:$0xff] %v733
        %750 = vst [vmem:[%s271 + $0x68] sm:$0xff] %v734
        %751 = vst [vmem:[%s271 + $0x70] sm:$0xff] %v735
        %752 = vst [vmem:[%s271 + $0x78] sm:$0xff] %v736
        %s753 = sand.u32 %s141, 1
        %s754 = scalar_lea.sflag [#allocation4], %s753
        %s755 = sand.u32 %s141, 1
        %s756 = smul.addr %s755, 128
        %s757 = scalar_lea.vmem [#allocation8], %s756
        // Predicated region
        $region53: #{tpu_custom_call.1} parent=39 // pred_check
          %p758 = pneg %p151
        $region54: #{tpu_custom_call.1} parent=39 // pred_check_branch
          %760 = sbr.rel (%p758) target = $region56
        $region55: #{tpu_custom_call.1} parent=39 // pred_region
          %s762 = ssub.s32 2048, 2048
          %763 = vsyncadd %s754, %s762
          %s764 = smul.addr %s23, 16
          %s765 = smul.addr %s764, 128
          %s766 = scalar_lea.hbm %s5, %s765
          %s767 = sshll.u32 %s757, 4
          %s768 = int_to_ptr.vmem [resolvable:$true] %s767
          %773 = dma.vmem_to_hbm [thread:$0]  %s768, 2048, %s766, %s754, 128, 128, 8
        $region56: #{tpu_custom_call.1} parent=39 // pred_fallthru
          _
      $region40: #{tpu_custom_call.1} parent=5 // pred_fallthru
        _
      %p774 = scmp.le.s32.totalorder 2, %s18
      // Predicated region
      $region57: #{tpu_custom_call.1} parent=5 // pred_check
        %p775 = pneg %p774
      $region58: #{tpu_custom_call.1} parent=5 // pred_check_branch
        %777 = sbr.rel (%p775) target = $region60
      $region59: #{tpu_custom_call.1} parent=5 // pred_region
        %s778 = ssub.s32 %s18, 2
        // Predicated region
        $region61: #{tpu_custom_call.1} parent=59 // pred_check
          %p779 = pneg %p157
        $region62: #{tpu_custom_call.1} parent=59 // pred_check_branch
          %781 = sbr.rel (%p779) target = $region64
        $region63: #{tpu_custom_call.1} parent=59 // pred_region
          %s782 = sand.u32 %s142, 1
          %s783 = scalar_lea.sflag [#allocation4], %s782
          %s784 = sand.u32 %s142, 1
          %s785 = smul.addr %s784, 128
          %s786 = scalar_lea.vmem [#allocation8], %s785
          %787 = dma.done %s783, 2048
        $region64: #{tpu_custom_call.1} parent=59 // pred_fallthru
          _
      $region60: #{tpu_custom_call.1} parent=5 // pred_fallthru
        _
    $region6: #{tpu_custom_call.1} parent=1 // loop_footer
      %s22 = sadd.s32 1, %s18
    $region7: #{tpu_custom_call.1} parent=1 // loop_footer_branch
      %17 = sbr.rel target = $region3
    $region8: #{tpu_custom_call.1} parent=1 // loop_exit
      _
    %788 = vsyncpa [#allocation3], 1
    %s789 = scalar_lea.sflag [#allocation3], 1
    %790 = vsyncpa %s789, 1
    %791 = vsyncpa [#allocation6], 1
    %792 = vsyncpa [#allocation4], 1
    %s793 = scalar_lea.sflag [#allocation4], 1
    %794 = vsyncpa %s793, 1

</llo_original>
